<compile_context>
chip_gen: v6e
topology: v6e:2x2x1
jax: 0.10.0
libtpu: 0.0.40
codegen_flags: <defaults>
</compile_context>

<pallas_src>
import jax
import jax.numpy as jnp
from jax.experimental import pallas as pl
from jax.experimental.pallas import tpu as pltpu


_LANE_WIDTHS = (1024, 512, 256, 128)        # candidate lane-dense row widths
_TARGET_BLOCK_BYTES = 4 * 1024 * 1024       # ~4 MiB per input block
_MIN_PALLAS_BYTES = 64 * 1024               # below this, plain XLA wins
_MEGACORE_SPLIT_BYTES = 1 * 1024 * 1024     # force >= 2 grid steps above this
_VMEM_LIMIT_BYTES = 32 * 1024 * 1024        # 2x(in+out) 4 MiB blocks + headroom


def _scale_kernel(s_ref, x_ref, o_ref):
    """s_ref: (1,) f32 scalar in SMEM; x_ref / o_ref: (block_rows, W) VMEM tiles.

    The scalar is cast to the tile dtype *before* the multiply so bf16/fp16
    inputs are computed in their packed dtype (no f32 promotion of the tile).
    """
    o_ref[...] = x_ref[...] * s_ref[0].astype(x_ref.dtype)


def scale_forward(x, scale, *, donate_input=False):
    """y = x * scale, matching Scale.forward (scale: shape-(1,) parameter)."""
    assert scale.size == 1, "Scale expects a single-element parameter"
    orig_shape = x.shape
    n = x.size
    itemsize = jnp.dtype(x.dtype).itemsize
    total_bytes = n * itemsize

    # Widest lane-dense row width (multiple of 128) that divides n exactly,
    # so no padding / slicing passes over HBM are ever needed.
    lane_w = next((w for w in _LANE_WIDTHS if n % w == 0), None)

    if lane_w is None or total_bytes < _MIN_PALLAS_BYTES:
        # Tiny tensors: pallas_call launch overhead dominates; XLA's fused
        # scalar multiply is already at the HBM roofline.
        # TODO(synk): element counts not divisible by the 128-lane width also
        # take this plain XLA path (a padded Pallas path would cost extra full
        # read+write passes over the tensor).
        return x * scale.reshape(()).astype(x.dtype)

    rows = n // lane_w
    x2d = x.reshape(rows, lane_w)            # free reshape, no data movement

    # Byte-targeted block size (multiple of 8 sublanes).
    block_rows = max(8, (_TARGET_BLOCK_BYTES // (lane_w * itemsize)) // 8 * 8)
    if total_bytes >= _MEGACORE_SPLIT_BYTES:
        # Guarantee >= 2 grid steps so both v7x TensorCores get work and the
        # input/output DMA pipeline overlaps compute.
        half_rows = pl.cdiv(pl.cdiv(rows, 2), 8) * 8
        block_rows = min(block_rows, half_rows)
    if block_rows >= rows:
        block_rows = rows                    # single full-extent block
    # Last block may be ragged: Pallas pads the reads and masks the writes.
    num_blocks = pl.cdiv(rows, block_rows)

    out2d = pl.pallas_call(
        _scale_kernel,
        out_shape=jax.ShapeDtypeStruct((rows, lane_w), x.dtype),
        grid=(num_blocks,),
        in_specs=[
            pl.BlockSpec(memory_space=pltpu.MemorySpace.SMEM),      # scale (1,)
            pl.BlockSpec((block_rows, lane_w), lambda i: (i, 0)),   # x tile
        ],
        out_specs=pl.BlockSpec((block_rows, lane_w), lambda i: (i, 0)),
        input_output_aliases=({1: 0} if donate_input else {}),
        compiler_params=pltpu.CompilerParams(
            dimension_semantics=("parallel",),
            vmem_limit_bytes=_VMEM_LIMIT_BYTES,
        ),
    )(scale.reshape(1).astype(jnp.float32), x2d)

    return out2d.reshape(orig_shape)


if __name__ == "__main__":
    key = jax.random.PRNGKey(0)
    scale = jnp.array([0.001], dtype=jnp.float32)   # Scale() default init_value

    tests = [
        ((2, 4, 16, 16), jnp.float32),     # 8 KiB  -> tiny XLA short-circuit
        ((2, 8, 48, 48), jnp.float32),     # 144 KiB -> single-block Pallas path
        ((1, 12, 160, 160), jnp.float32),  # 1.2 MiB -> 2 blocks, ragged tail
        ((2, 8, 48, 48), jnp.bfloat16),    # bf16 stays in packed bf16
    ]

    for shape, dtype in tests:
        key, sub = jax.random.split(key)
        x = jax.random.normal(sub, shape, dtype=jnp.float32).astype(dtype)

        y = jax.block_until_ready(scale_forward(x, scale))
        y_ref = x * scale.reshape(()).astype(dtype)

        assert y.shape == x.shape and y.dtype == x.dtype, (y.shape, y.dtype)
        tol = 1e-6 if dtype == jnp.float32 else 2e-2
        diff = jnp.max(jnp.abs(y.astype(jnp.float32) - y_ref.astype(jnp.float32)))
        assert jnp.allclose(
            y.astype(jnp.float32), y_ref.astype(jnp.float32), atol=tol, rtol=tol
        ), (shape, str(dtype), float(diff))

    print("KERNEL_OK")
</pallas_src>

<mosaic_0001>
module attributes {stable_mosaic.version = 11 : i64} {
  func.func @_scale_kernel(%arg0: i32, %arg1: memref<1xf32, #tpu.memory_space<smem>>, %arg2: memref<36x1024xf32, #tpu.memory_space<vmem>>, %arg3: memref<36x1024xf32, #tpu.memory_space<vmem>>) attributes {dimension_semantics = [#tpu.dimension_semantics<parallel>], iteration_bounds = array<i64: 1>, scalar_prefetch = 0 : i64, scratch_operands = 0 : i64, tpu.core_type = #tpu.core_type<tc>, window_params = [{transform_indices = @transform_0, window_bounds = array<i64: 1>}, {transform_indices = @transform_1, window_bounds = array<i64: 36, 1024>}, {transform_indices = @transform_2, window_bounds = array<i64: 36, 1024>}]} {
    %c0 = arith.constant 0 : index
    %c0_0 = arith.constant 0 : index
    %0 = vector.load %arg2[%c0, %c0_0] : memref<36x1024xf32, #tpu.memory_space<vmem>>, vector<36x1024xf32>
    %c0_1 = arith.constant 0 : index
    %1 = memref.load %arg1[%c0_1] : memref<1xf32, #tpu.memory_space<smem>>
    %2 = vector.broadcast %1 : f32 to vector<36x1024xf32>
    %3 = arith.mulf %0, %2 : vector<36x1024xf32>
    %c0_2 = arith.constant 0 : index
    %c0_3 = arith.constant 0 : index
    %4 = vector.load %arg3[%c0_2, %c0_3] : memref<36x1024xf32, #tpu.memory_space<vmem>>, vector<36x1024xf32>
    tpu.vector_store %arg3[%c0_2, %c0_3], %3 {strides = array<i32>} : memref<36x1024xf32, #tpu.memory_space<vmem>>, vector<36x1024xf32>,
    return
  }
  func.func @transform_0(%arg0: i32) -> i32 {
    %c0_i32 = arith.constant 0 : i32
    %c0_i32_0 = arith.constant 0 : i32
    return %c0_i32 : i32
  }
  func.func @transform_1(%arg0: i32) -> (i32, i32) {
    %c0_i32 = arith.constant 0 : i32
    %c0_i32_0 = arith.constant 0 : i32
    return %arg0, %c0_i32 : i32, i32
  }
  func.func @transform_2(%arg0: i32) -> (i32, i32) {
    %c0_i32 = arith.constant 0 : i32
    %c0_i32_0 = arith.constant 0 : i32
    return %arg0, %c0_i32 : i32, i32
  }
}

</mosaic_0001>

<llo_original>
// kernel: tpu_custom_call.1
$region0: #{tpu_custom_call.1}
  #allocation0 [shape = 'u32[]', space=smem, size = 0x4, offset = 0x4, fixed_abs, tag = 'smem constant byte address 0x4 - core index']
  #allocation1 [shape = 'u32[144,128]{1,0:T(1,128)}', space=vmem, size = 0x12000, scoped, tag = 'internal scratch']
  #allocation2 [shape = 'f32[1]{0:T(128)S(6)}', space=smem, size = 0x200, scoped, tag = 'scoped memory for tpu_custom_call.1']
  %s0 = inlined_call_operand.<no memory space> [shape: f32[1], index: 0, kind: input, shape index: {}]
  %s1 = inlined_call_operand.hbm [shape: f32[36,1024], index: 1, kind: input, shape index: {}]
  %s2 = inlined_call_operand.hbm [shape: f32[36,1024], index: 2, kind: output, shape index: {}]
  %s3 = sld [smem:[#allocation0]]
  $region22: #{tpu_custom_call.1} parent=0
    _
  %s5 = ssub.s32 1, %s3
  %s6 = scalar_select 0, %s5, %s3
  %7 = sst [smem:[#allocation2]] %s0
  $region1: #{tpu_custom_call.1} parent=0
    #allocation3 [shape = 'u8[163840]{0}', space=vmem, size = 0x28000, scoped, tag = 'input window, operand 1, single buffered']
    #allocation4 [shape = 's32[1]{0}', space=sflag, size = 0x4, scoped, tag = 'scoped memory for tpu_custom_call.1']
    #allocation5 [shape = 's32[1]{0}', space=sflag, size = 0x4, scoped, tag = 'scoped memory for tpu_custom_call.1']
    #allocation6 [shape = 'u8[163840]{0}', space=vmem, size = 0x28000, scoped, tag = 'output window, operand 0, single buffered']
    %8 = vsyncpa [#allocation4], 0
    %9 = vsyncpa [#allocation5], 0
    // Predicated region
    $region2: #{tpu_custom_call.1} parent=1 // pred_check
      _
    $region3: #{tpu_custom_call.1} parent=1 // pred_check_branch
      %11 = sbr.rel (0) target = $region5
    $region4: #{tpu_custom_call.1} parent=1 // pred_region
      _
    $region5: #{tpu_custom_call.1} parent=1 // pred_fallthru
      _
    // Predicated region
    $region6: #{tpu_custom_call.1} parent=1 // pred_check
      _
    $region7: #{tpu_custom_call.1} parent=1 // pred_check_branch
      %13 = sbr.rel (0) target = $region9
    $region8: #{tpu_custom_call.1} parent=1 // pred_region
      %s15 = ssub.s32 5120, 5120
      %16 = vsyncadd [#allocation4], %s15
      %s17 = sshll.u32 [#allocation3], 4
      %s18 = int_to_ptr.vmem [resolvable:$true] %s17
      %23 = dma.hbm_to_vmem [thread:$0]  %s1, 5120, %s18, [#allocation4], 1024, 1024, 64
    $region9: #{tpu_custom_call.1} parent=1 // pred_fallthru
      _
    // Predicated region
    $region10: #{tpu_custom_call.1} parent=1 // pred_check
      _
    $region11: #{tpu_custom_call.1} parent=1 // pred_check_branch
      %25 = sbr.rel (0) target = $region13
    $region12: #{tpu_custom_call.1} parent=1 // pred_region
      %26 = dma.done [#allocation4], 5120
    $region13: #{tpu_custom_call.1} parent=1 // pred_fallthru
      _
    %v27 = vld [vmem:[#allocation3] sm:$0xff]
    %v28 = vld [vmem:[#allocation3 + $0x8] sm:$0xff]
    %v29 = vld [vmem:[#allocation3 + $0x10] sm:$0xff]
    %v30 = vld [vmem:[#allocation3 + $0x18] sm:$0xff]
    %v31 = vld [vmem:[#allocation3 + $0x20] sm:$0xff]
    %v32 = vld [vmem:[#allocation3 + $0x28] sm:$0xff]
    %v33 = vld [vmem:[#allocation3 + $0x30] sm:$0xff]
    %v34 = vld [vmem:[#allocation3 + $0x38] sm:$0xff]
    %v35 = vld [vmem:[#allocation3 + $0x40] sm:$0xff]
    %v36 = vld [vmem:[#allocation3 + $0x48] sm:$0xff]
    %v37 = vld [vmem:[#allocation3 + $0x50] sm:$0xff]
    %v38 = vld [vmem:[#allocation3 + $0x58] sm:$0xff]
    %v39 = vld [vmem:[#allocation3 + $0x60] sm:$0xff]
    %v40 = vld [vmem:[#allocation3 + $0x68] sm:$0xff]
    %v41 = vld [vmem:[#allocation3 + $0x70] sm:$0xff]
    %v42 = vld [vmem:[#allocation3 + $0x78] sm:$0xff]
    %v43 = vld [vmem:[#allocation3 + $0x80] sm:$0xff]
    %v44 = vld [vmem:[#allocation3 + $0x88] sm:$0xff]
    %v45 = vld [vmem:[#allocation3 + $0x90] sm:$0xff]
    %v46 = vld [vmem:[#allocation3 + $0x98] sm:$0xff]
    %v47 = vld [vmem:[#allocation3 + $0xa0] sm:$0xff]
    %v48 = vld [vmem:[#allocation3 + $0xa8] sm:$0xff]
    %v49 = vld [vmem:[#allocation3 + $0xb0] sm:$0xff]
    %v50 = vld [vmem:[#allocation3 + $0xb8] sm:$0xff]
    %v51 = vld [vmem:[#allocation3 + $0xc0] sm:$0xff]
    %v52 = vld [vmem:[#allocation3 + $0xc8] sm:$0xff]
    %v53 = vld [vmem:[#allocation3 + $0xd0] sm:$0xff]
    %v54 = vld [vmem:[#allocation3 + $0xd8] sm:$0xff]
    %v55 = vld [vmem:[#allocation3 + $0xe0] sm:$0xff]
    %v56 = vld [vmem:[#allocation3 + $0xe8] sm:$0xff]
    %v57 = vld [vmem:[#allocation3 + $0xf0] sm:$0xff]
    %v58 = vld [vmem:[#allocation3 + $0xf8] sm:$0xff]
    %v59 = vld [vmem:[#allocation3 + $0x100] sm:$0xf]
    %v60 = vld [vmem:[#allocation3 + $0x108] sm:$0xf]
    %v61 = vld [vmem:[#allocation3 + $0x110] sm:$0xf]
    %v62 = vld [vmem:[#allocation3 + $0x118] sm:$0xf]
    %v63 = vld [vmem:[#allocation3 + $0x120] sm:$0xf]
    %v64 = vld [vmem:[#allocation3 + $0x128] sm:$0xf]
    %v65 = vld [vmem:[#allocation3 + $0x130] sm:$0xf]
    %v66 = vld [vmem:[#allocation3 + $0x138] sm:$0xf]
    %s67 = sld [smem:[#allocation2]]
    %v68 = vstv %s67
    %v69 = vmul.f32 %v27, %v68
    %v70 = vmul.f32 %v28, %v68
    %v71 = vmul.f32 %v29, %v68
    %v72 = vmul.f32 %v30, %v68
    %v73 = vmul.f32 %v31, %v68
    %v74 = vmul.f32 %v32, %v68
    %v75 = vmul.f32 %v33, %v68
    %v76 = vmul.f32 %v34, %v68
    %v77 = vmul.f32 %v35, %v68
    %v78 = vmul.f32 %v36, %v68
    %v79 = vmul.f32 %v37, %v68
    %v80 = vmul.f32 %v38, %v68
    %v81 = vmul.f32 %v39, %v68
    %v82 = vmul.f32 %v40, %v68
    %v83 = vmul.f32 %v41, %v68
    %v84 = vmul.f32 %v42, %v68
    %v85 = vmul.f32 %v43, %v68
    %v86 = vmul.f32 %v44, %v68
    %v87 = vmul.f32 %v45, %v68
    %v88 = vmul.f32 %v46, %v68
    %v89 = vmul.f32 %v47, %v68
    %v90 = vmul.f32 %v48, %v68
    %v91 = vmul.f32 %v49, %v68
    %v92 = vmul.f32 %v50, %v68
    %v93 = vmul.f32 %v51, %v68
    %v94 = vmul.f32 %v52, %v68
    %v95 = vmul.f32 %v53, %v68
    %v96 = vmul.f32 %v54, %v68
    %v97 = vmul.f32 %v55, %v68
    %v98 = vmul.f32 %v56, %v68
    %v99 = vmul.f32 %v57, %v68
    %v100 = vmul.f32 %v58, %v68
    %v101 = vmul.f32 %v59, %v68
    %v102 = vmul.f32 %v60, %v68
    %v103 = vmul.f32 %v61, %v68
    %v104 = vmul.f32 %v62, %v68
    %v105 = vmul.f32 %v63, %v68
    %v106 = vmul.f32 %v64, %v68
    %v107 = vmul.f32 %v65, %v68
    %v108 = vmul.f32 %v66, %v68
    %109 = vst [vmem:[#allocation6] sm:$0xff] %v69
    %110 = vst [vmem:[#allocation6 + $0x8] sm:$0xff] %v70
    %111 = vst [vmem:[#allocation6 + $0x10] sm:$0xff] %v71
    %112 = vst [vmem:[#allocation6 + $0x18] sm:$0xff] %v72
    %113 = vst [vmem:[#allocation6 + $0x20] sm:$0xff] %v73
    %114 = vst [vmem:[#allocation6 + $0x28] sm:$0xff] %v74
    %115 = vst [vmem:[#allocation6 + $0x30] sm:$0xff] %v75
    %116 = vst [vmem:[#allocation6 + $0x38] sm:$0xff] %v76
    %117 = vst [vmem:[#allocation6 + $0x40] sm:$0xff] %v77
    %118 = vst [vmem:[#allocation6 + $0x48] sm:$0xff] %v78
    %119 = vst [vmem:[#allocation6 + $0x50] sm:$0xff] %v79
    %120 = vst [vmem:[#allocation6 + $0x58] sm:$0xff] %v80
    %121 = vst [vmem:[#allocation6 + $0x60] sm:$0xff] %v81
    %122 = vst [vmem:[#allocation6 + $0x68] sm:$0xff] %v82
    %123 = vst [vmem:[#allocation6 + $0x70] sm:$0xff] %v83
    %124 = vst [vmem:[#allocation6 + $0x78] sm:$0xff] %v84
    %125 = vst [vmem:[#allocation6 + $0x80] sm:$0xff] %v85
    %126 = vst [vmem:[#allocation6 + $0x88] sm:$0xff] %v86
    %127 = vst [vmem:[#allocation6 + $0x90] sm:$0xff] %v87
    %128 = vst [vmem:[#allocation6 + $0x98] sm:$0xff] %v88
    %129 = vst [vmem:[#allocation6 + $0xa0] sm:$0xff] %v89
    %130 = vst [vmem:[#allocation6 + $0xa8] sm:$0xff] %v90
    %131 = vst [vmem:[#allocation6 + $0xb0] sm:$0xff] %v91
    %132 = vst [vmem:[#allocation6 + $0xb8] sm:$0xff] %v92
    %133 = vst [vmem:[#allocation6 + $0xc0] sm:$0xff] %v93
    %134 = vst [vmem:[#allocation6 + $0xc8] sm:$0xff] %v94
    %135 = vst [vmem:[#allocation6 + $0xd0] sm:$0xff] %v95
    %136 = vst [vmem:[#allocation6 + $0xd8] sm:$0xff] %v96
    %137 = vst [vmem:[#allocation6 + $0xe0] sm:$0xff] %v97
    %138 = vst [vmem:[#allocation6 + $0xe8] sm:$0xff] %v98
    %139 = vst [vmem:[#allocation6 + $0xf0] sm:$0xff] %v99
    %140 = vst [vmem:[#allocation6 + $0xf8] sm:$0xff] %v100
    %141 = vst [vmem:[#allocation6 + $0x100] sm:$0xf] %v101
    %142 = vst [vmem:[#allocation6 + $0x108] sm:$0xf] %v102
    %143 = vst [vmem:[#allocation6 + $0x110] sm:$0xf] %v103
    %144 = vst [vmem:[#allocation6 + $0x118] sm:$0xf] %v104
    %145 = vst [vmem:[#allocation6 + $0x120] sm:$0xf] %v105
    %146 = vst [vmem:[#allocation6 + $0x128] sm:$0xf] %v106
    %147 = vst [vmem:[#allocation6 + $0x130] sm:$0xf] %v107
    %148 = vst [vmem:[#allocation6 + $0x138] sm:$0xf] %v108
    // Predicated region
    $region14: #{tpu_custom_call.1} parent=1 // pred_check
      _
    $region15: #{tpu_custom_call.1} parent=1 // pred_check_branch
      %150 = sbr.rel (0) target = $region17
    $region16: #{tpu_custom_call.1} parent=1 // pred_region
      %s152 = ssub.s32 5120, 5120
      %153 = vsyncadd [#allocation5], %s152
      %s154 = sshll.u32 [#allocation6], 4
      %s155 = int_to_ptr.vmem [resolvable:$true] %s154
      %160 = dma.vmem_to_hbm [thread:$0]  %s155, 5120, %s2, [#allocation5], 1024, 1024, 64
    $region17: #{tpu_custom_call.1} parent=1 // pred_fallthru
      _
    // Predicated region
    $region18: #{tpu_custom_call.1} parent=1 // pred_check
      _
    $region19: #{tpu_custom_call.1} parent=1 // pred_check_branch
      %162 = sbr.rel (0) target = $region21
    $region20: #{tpu_custom_call.1} parent=1 // pred_region
      %163 = dma.done [#allocation5], 5120
    $region21: #{tpu_custom_call.1} parent=1 // pred_fallthru
      _
    %164 = vsyncpa [#allocation4], 1
    %165 = vsyncpa [#allocation5], 1

</llo_original>
